<compile_context>
chip_gen: v6e
topology: v6e:2x2x1
jax: 0.10.0
libtpu: 0.0.40
codegen_flags: <defaults>
</compile_context>

<pallas_src>
import functools

import jax
import jax.numpy as jnp
from jax.experimental import pallas as pl
from jax.experimental.pallas import tpu as pltpu


# ----------------------------------------------------------------------------- helpers
def _round_up(x, m):
    return ((x + m - 1) // m) * m


def _largest_divisor_leq(n, cap):
    cap = max(1, min(n, cap))
    for d in range(cap, 0, -1):
        if n % d == 0:
            return d
    return 1


def _choose_lane_tile(hw, max_lanes):
    """Pick a lane tile (multiple of 128) and padded spatial extent (multiple of
    the tile).  Prefers tiles that divide the 128-rounded extent exactly so no
    extra padding beyond lane alignment is materialized."""
    hw128 = _round_up(hw, 128)
    max_lanes = max(128, (max_lanes // 128) * 128)
    if hw128 <= max_lanes:
        return hw128, hw128
    m = hw128 // 128
    best = 128
    for d in range(1, min(m, max_lanes // 128) + 1):
        if m % d == 0:
            best = d * 128
    if best >= max_lanes // 4 or max_lanes < 512:
        return best, hw128                      # exact divisor, no extra pad
    tile = min(max_lanes, 8192)                 # bigger lane-dense tile, ragged pad
    return tile, _round_up(hw, tile)


def _mlp_att(pooled, w1_t, b1, w2_t, b2):
    """sigmoid(relu(pooled @ w1_t + b1) @ w2_t + b2) — (Nb, C) -> (Nb, C)."""
    h = jnp.dot(pooled, w1_t, preferred_element_type=jnp.float32) + b1
    h = jnp.maximum(h, 0.0)
    a = jnp.dot(h, w2_t, preferred_element_type=jnp.float32) + b2
    return jax.nn.sigmoid(a)


# ----------------------------------------------------------------------------- kernels
def _bam_fused_kernel(x_ref, w1_ref, b1_ref, w2_ref, b2_ref, o_ref, *, inv_hw):
    # x_ref: (Nb, C, HWp).  Padded lanes (if any) are zero, so the sum is exact;
    # inv_hw divides by the true H*W.
    pooled = jnp.sum(x_ref[...].astype(jnp.float32), axis=2) * inv_hw       # (Nb, C)
    att = _mlp_att(pooled, w1_ref[...], b1_ref[...], w2_ref[...], b2_ref[...])
    o_ref[...] = (x_ref[...].astype(jnp.float32) * att[:, :, None]).astype(o_ref.dtype)


def _bam_pool_att_kernel(x_ref, w1_ref, b1_ref, w2_ref, b2_ref,
                         att_ref, acc_ref, *, inv_hw):
    # grid = (N, HW_tiles); HW tiles (reduction) is the last ("arbitrary") axis.
    t = pl.program_id(1)

    @pl.when(t == 0)
    def _init():
        acc_ref[...] = jnp.zeros_like(acc_ref)

    acc_ref[...] += jnp.sum(x_ref[...].astype(jnp.float32), axis=2)         # (1, C)

    @pl.when(t == pl.num_programs(1) - 1)
    def _finalize():
        pooled = acc_ref[...] * inv_hw
        att = _mlp_att(pooled, w1_ref[...], b1_ref[...], w2_ref[...], b2_ref[...])
        att_ref[...] = att[:, None, :]                                      # (1, 1, C)


def _bam_scale_kernel(att_ref, x_ref, o_ref):
    att = att_ref[...][:, 0, :]                                             # (1, C)
    o_ref[...] = (x_ref[...].astype(jnp.float32) * att[:, :, None]).astype(o_ref.dtype)


# ----------------------------------------------------------------------------- wrapper
def bam_forward(x_nchw, w1, b1, w2, b2, *, vmem_budget_bytes=24 * 1024 * 1024):
    """x_nchw: (N, C, H, W) float32/bfloat16.  w1: (C//16, C), b1: (C//16,),
    w2: (C, C//16), b2: (C,).  Returns (N, C, H, W) in x.dtype."""
    N, C, H, W = x_nchw.shape
    hidden = w1.shape[0]
    HW = H * W
    itemsize = jnp.dtype(x_nchw.dtype).itemsize

    # Pre-transpose the tiny 1x1-conv weights so in-kernel matmuls are plain
    # row-major GEMMs; biases as 2-D rows for clean VMEM layout.
    w1_t = jnp.asarray(w1, jnp.float32).T              # (C, hidden)
    w2_t = jnp.asarray(w2, jnp.float32).T              # (hidden, C)
    b1_2d = jnp.asarray(b1, jnp.float32).reshape(1, hidden)
    b2_2d = jnp.asarray(b2, jnp.float32).reshape(1, C)
    weight_bytes = 4 * (C * hidden * 2 + hidden + C) * 4   # double-buffered, tiny

    hw128 = _round_up(HW, 128)
    per_batch_block = 4 * C * hw128 * itemsize          # x + out, double-buffered

    # ---------------- fused single-pass path (whole (Nb, C, HW) slab fits VMEM)
    if per_batch_block <= vmem_budget_bytes:
        nb_cap = vmem_budget_bytes // per_batch_block
        # once per-step DMAs are already large, keep >=2 grid steps so both
        # v7x TensorCores get work (no-op on single-TC v5e/v6e).
        if N >= 2 and C * hw128 * itemsize >= (512 << 10):
            nb_cap = min(nb_cap, max(1, N // 2))
        Nb = _largest_divisor_leq(N, nb_cap)

        x_flat = x_nchw.reshape(N, C, HW)
        if hw128 != HW:
            x_flat = jnp.pad(x_flat, ((0, 0), (0, 0), (0, hw128 - HW)))

        est = Nb * per_batch_block + weight_bytes
        vmem_limit = int(min(max(est + (8 << 20), 16 << 20), 48 << 20))

        out_flat = pl.pallas_call(
            functools.partial(_bam_fused_kernel, inv_hw=1.0 / HW),
            out_shape=jax.ShapeDtypeStruct((N, C, hw128), x_nchw.dtype),
            grid_spec=pltpu.PrefetchScalarGridSpec(
                num_scalar_prefetch=0,
                grid=(N // Nb,),
                in_specs=[
                    pl.BlockSpec((Nb, C, hw128), lambda n: (n, 0, 0)),
                    pl.BlockSpec((C, hidden), lambda n: (0, 0)),
                    pl.BlockSpec((1, hidden), lambda n: (0, 0)),
                    pl.BlockSpec((hidden, C), lambda n: (0, 0)),
                    pl.BlockSpec((1, C), lambda n: (0, 0)),
                ],
                out_specs=pl.BlockSpec((Nb, C, hw128), lambda n: (n, 0, 0)),
            ),
            compiler_params=pltpu.CompilerParams(
                dimension_semantics=("parallel",),
                vmem_limit_bytes=vmem_limit),
        )(x_flat, w1_t, b1_2d, w2_t, b2_2d)
        return out_flat[:, :, :HW].reshape(N, C, H, W)

    # ---------------- large spatial maps: two passes with HW-tiled grids so only
    # an (C, THW) chunk of x/out is resident (VMEM-safe on v7x/v5e).
    max_lanes = vmem_budget_bytes // (4 * C * itemsize)
    thw, hwp = _choose_lane_tile(HW, max_lanes)
    n_hw = hwp // thw

    x_flat = x_nchw.reshape(N, C, HW)
    if hwp != HW:
        x_flat = jnp.pad(x_flat, ((0, 0), (0, 0), (0, hwp - HW)))

    est = 4 * C * thw * itemsize + weight_bytes + 16 * C * 4
    vmem_limit = int(min(max(est + (8 << 20), 16 << 20), 48 << 20))

    # Pass 1: tiled global-average-pool reduction + tiny channel MLP -> att.
    att = pl.pallas_call(
        functools.partial(_bam_pool_att_kernel, inv_hw=1.0 / HW),
        out_shape=jax.ShapeDtypeStruct((N, 1, C), jnp.float32),
        grid_spec=pltpu.PrefetchScalarGridSpec(
            num_scalar_prefetch=0,
            grid=(N, n_hw),
            in_specs=[
                pl.BlockSpec((1, C, thw), lambda n, t: (n, 0, t)),
                pl.BlockSpec((C, hidden), lambda n, t: (0, 0)),
                pl.BlockSpec((1, hidden), lambda n, t: (0, 0)),
                pl.BlockSpec((hidden, C), lambda n, t: (0, 0)),
                pl.BlockSpec((1, C), lambda n, t: (0, 0)),
            ],
            out_specs=pl.BlockSpec((1, 1, C), lambda n, t: (n, 0, 0)),
            scratch_shapes=[pltpu.VMEM((1, C), jnp.float32)],
        ),
        compiler_params=pltpu.CompilerParams(
            dimension_semantics=("parallel", "arbitrary"),
            vmem_limit_bytes=vmem_limit),
    )(x_flat, w1_t, b1_2d, w2_t, b2_2d)

    # Pass 2: pure tiled broadcast-multiply (lane-dense stores, HBM roofline).
    out_flat = pl.pallas_call(
        _bam_scale_kernel,
        out_shape=jax.ShapeDtypeStruct((N, C, hwp), x_nchw.dtype),
        grid_spec=pltpu.PrefetchScalarGridSpec(
            num_scalar_prefetch=0,
            grid=(N, n_hw),
            in_specs=[
                pl.BlockSpec((1, 1, C), lambda n, t: (n, 0, 0)),
                pl.BlockSpec((1, C, thw), lambda n, t: (n, 0, t)),
            ],
            out_specs=pl.BlockSpec((1, C, thw), lambda n, t: (n, 0, t)),
        ),
        compiler_params=pltpu.CompilerParams(
            dimension_semantics=("parallel", "parallel"),
            vmem_limit_bytes=vmem_limit),
    )(att, x_flat)
    return out_flat[:, :, :HW].reshape(N, C, H, W)


# ----------------------------------------------------------------------------- params / reference
def init_bam_params(key, channels):
    """Deterministic init mimicking PyTorch Conv2d default (uniform, fan_in scaled)."""
    hidden = channels // 16
    assert hidden >= 1, "BAM requires channels >= 16"
    k1, k2, k3, k4 = jax.random.split(key, 4)
    bound1 = 1.0 / (channels ** 0.5)
    bound2 = 1.0 / (hidden ** 0.5)
    w1 = jax.random.uniform(k1, (hidden, channels), jnp.float32, -bound1, bound1)
    b1 = jax.random.uniform(k2, (hidden,), jnp.float32, -bound1, bound1)
    w2 = jax.random.uniform(k3, (channels, hidden), jnp.float32, -bound2, bound2)
    b2 = jax.random.uniform(k4, (channels,), jnp.float32, -bound2, bound2)
    return w1, b1, w2, b2


def bam_reference(x, w1, b1, w2, b2):
    """Pure-JAX reference of the PyTorch forward."""
    pooled = jnp.mean(x.astype(jnp.float32), axis=(2, 3))   # (N, C)
    h = jnp.maximum(pooled @ w1.T + b1, 0.0)                # (N, C//16)
    att = jax.nn.sigmoid(h @ w2.T + b2)                     # (N, C)
    return (x.astype(jnp.float32) * att[:, :, None, None]).astype(x.dtype)


# ----------------------------------------------------------------------------- test
if __name__ == "__main__":
    key = jax.random.PRNGKey(0)
    kx, kp, kx2 = jax.random.split(key, 3)

    # Case 1: small, lane-aligned spatial map (HW = 256) -> fused single-pass path.
    N, C, H, W = 2, 32, 16, 16                              # hidden = C // 16 = 2
    x = jax.random.normal(kx, (N, C, H, W), dtype=jnp.float32)
    w1, b1, w2, b2 = init_bam_params(kp, C)

    out = jax.block_until_ready(bam_forward(x, w1, b1, w2, b2))
    ref = bam_reference(x, w1, b1, w2, b2)
    assert out.shape == (N, C, H, W)
    assert jnp.allclose(out, ref, atol=1e-5, rtol=1e-5), "fused path mismatch"

    # Case 2: non-128-multiple spatial size (14*14 = 196) -> exercises lane padding.
    H2, W2 = 14, 14
    x2 = jax.random.normal(kx2, (N, C, H2, W2), dtype=jnp.float32)
    out2 = jax.block_until_ready(bam_forward(x2, w1, b1, w2, b2))
    ref2 = bam_reference(x2, w1, b1, w2, b2)
    assert jnp.allclose(out2, ref2, atol=1e-5, rtol=1e-5), "padded path mismatch"

    # Case 3: force the HW-tiled two-pass path with a tiny VMEM budget
    # (keeps shapes small but compiles/runs the large-feature-map code path).
    out3 = jax.block_until_ready(
        bam_forward(x, w1, b1, w2, b2, vmem_budget_bytes=64 * 1024))
    assert jnp.allclose(out3, ref, atol=1e-5, rtol=1e-5), "two-pass path mismatch"

    print("KERNEL_OK")
</pallas_src>

<mosaic_0001>
module attributes {stable_mosaic.version = 11 : i64} {
  func.func @_bam_fused_kernel(%arg0: i32, %arg1: memref<2x32x256xf32, #tpu.memory_space<vmem>>, %arg2: memref<32x2xf32, #tpu.memory_space<vmem>>, %arg3: memref<1x2xf32, #tpu.memory_space<vmem>>, %arg4: memref<2x32xf32, #tpu.memory_space<vmem>>, %arg5: memref<1x32xf32, #tpu.memory_space<vmem>>, %arg6: memref<2x32x256xf32, #tpu.memory_space<vmem>>) attributes {dimension_semantics = [#tpu.dimension_semantics<parallel>], iteration_bounds = array<i64: 1>, scalar_prefetch = 0 : i64, scratch_operands = 0 : i64, tpu.core_type = #tpu.core_type<tc>, window_params = [{transform_indices = @transform_0, window_bounds = array<i64: 2, 32, 256>}, {pipeline_mode = #tpu.pipeline_mode<synchronous>, transform_indices = @transform_1, window_bounds = array<i64: 32, 2>}, {pipeline_mode = #tpu.pipeline_mode<synchronous>, transform_indices = @transform_2, window_bounds = array<i64: 1, 2>}, {pipeline_mode = #tpu.pipeline_mode<synchronous>, transform_indices = @transform_3, window_bounds = array<i64: 2, 32>}, {pipeline_mode = #tpu.pipeline_mode<synchronous>, transform_indices = @transform_4, window_bounds = array<i64: 1, 32>}, {transform_indices = @transform_5, window_bounds = array<i64: 2, 32, 256>}]} {
    %c0 = arith.constant 0 : index
    %c0_0 = arith.constant 0 : index
    %c0_1 = arith.constant 0 : index
    %0 = vector.load %arg1[%c0, %c0_0, %c0_1] : memref<2x32x256xf32, #tpu.memory_space<vmem>>, vector<2x32x256xf32>
    %cst = arith.constant dense<0.000000e+00> : vector<2x32xf32>
    %1 = vector.multi_reduction <add>, %0, %cst [2] : vector<2x32x256xf32> to vector<2x32xf32>
    %cst_2 = arith.constant 3.906250e-03 : f32
    %2 = vector.broadcast %cst_2 : f32 to vector<2x32xf32>
    %3 = arith.mulf %1, %2 : vector<2x32xf32>
    %c0_3 = arith.constant 0 : index
    %c0_4 = arith.constant 0 : index
    %4 = vector.load %arg2[%c0_3, %c0_4] : memref<32x2xf32, #tpu.memory_space<vmem>>, vector<32x2xf32>
    %c0_5 = arith.constant 0 : index
    %c0_6 = arith.constant 0 : index
    %5 = vector.load %arg3[%c0_5, %c0_6] : memref<1x2xf32, #tpu.memory_space<vmem>>, vector<1x2xf32>
    %c0_7 = arith.constant 0 : index
    %c0_8 = arith.constant 0 : index
    %6 = vector.load %arg4[%c0_7, %c0_8] : memref<2x32xf32, #tpu.memory_space<vmem>>, vector<2x32xf32>
    %c0_9 = arith.constant 0 : index
    %c0_10 = arith.constant 0 : index
    %7 = vector.load %arg5[%c0_9, %c0_10] : memref<1x32xf32, #tpu.memory_space<vmem>>, vector<1x32xf32>
    %cst_11 = arith.constant dense<0.000000e+00> : vector<2x2xf32>
    %8 = tpu.matmul %3, %4, %cst_11 {dimension_numbers = #tpu.dot_dimension_numbers<[1], [0], [0], [1], [0, 0, 1, 1], [], []>} : vector<2x32xf32>, vector<32x2xf32>, vector<2x2xf32> -> vector<2x2xf32>
    %9 = vector.broadcast %5 : vector<1x2xf32> to vector<2x2xf32>
    %10 = arith.addf %8, %9 : vector<2x2xf32>
    %cst_12 = arith.constant 0.000000e+00 : f32
    %11 = vector.broadcast %cst_12 : f32 to vector<2x2xf32>
    %12 = arith.maximumf %10, %11 : vector<2x2xf32>
    %cst_13 = arith.constant dense<0.000000e+00> : vector<2x32xf32>
    %13 = tpu.matmul %12, %6, %cst_13 {dimension_numbers = #tpu.dot_dimension_numbers<[1], [0], [0], [1], [0, 0, 1, 1], [], []>} : vector<2x2xf32>, vector<2x32xf32>, vector<2x32xf32> -> vector<2x32xf32>
    %14 = vector.broadcast %7 : vector<1x32xf32> to vector<2x32xf32>
    %15 = arith.addf %13, %14 : vector<2x32xf32>
    %16 = arith.negf %15 : vector<2x32xf32>
    %17 = math.exp %16 : vector<2x32xf32>
    %cst_14 = arith.constant 1.000000e+00 : f32
    %18 = vector.broadcast %cst_14 : f32 to vector<2x32xf32>
    %19 = arith.addf %18, %17 : vector<2x32xf32>
    %20 = arith.divf %18, %19 : vector<2x32xf32>
    %c0_15 = arith.constant 0 : index
    %c0_16 = arith.constant 0 : index
    %c0_17 = arith.constant 0 : index
    %21 = vector.load %arg1[%c0_15, %c0_16, %c0_17] : memref<2x32x256xf32, #tpu.memory_space<vmem>>, vector<2x32x256xf32>
    %22 = vector.shape_cast %20 : vector<2x32xf32> to vector<2x32x1xf32>
    %23 = vector.broadcast %22 : vector<2x32x1xf32> to vector<2x32x256xf32>
    %24 = arith.mulf %21, %23 : vector<2x32x256xf32>
    %c0_18 = arith.constant 0 : index
    %c0_19 = arith.constant 0 : index
    %c0_20 = arith.constant 0 : index
    %25 = vector.load %arg6[%c0_18, %c0_19, %c0_20] : memref<2x32x256xf32, #tpu.memory_space<vmem>>, vector<2x32x256xf32>
    tpu.vector_store %arg6[%c0_18, %c0_19, %c0_20], %24 {strides = array<i32>} : memref<2x32x256xf32, #tpu.memory_space<vmem>>, vector<2x32x256xf32>,
    return
  }
  func.func @transform_0(%arg0: i32) -> (i32, i32, i32) {
    %c0_i32 = arith.constant 0 : i32
    %c0_i32_0 = arith.constant 0 : i32
    %c0_i32_1 = arith.constant 0 : i32
    return %arg0, %c0_i32, %c0_i32_0 : i32, i32, i32
  }
  func.func @transform_1(%arg0: i32) -> (i32, i32) {
    %c0_i32 = arith.constant 0 : i32
    %c0_i32_0 = arith.constant 0 : i32
    %c0_i32_1 = arith.constant 0 : i32
    return %c0_i32, %c0_i32_0 : i32, i32
  }
  func.func @transform_2(%arg0: i32) -> (i32, i32) {
    %c0_i32 = arith.constant 0 : i32
    %c0_i32_0 = arith.constant 0 : i32
    %c0_i32_1 = arith.constant 0 : i32
    return %c0_i32, %c0_i32_0 : i32, i32
  }
  func.func @transform_3(%arg0: i32) -> (i32, i32) {
    %c0_i32 = arith.constant 0 : i32
    %c0_i32_0 = arith.constant 0 : i32
    %c0_i32_1 = arith.constant 0 : i32
    return %c0_i32, %c0_i32_0 : i32, i32
  }
  func.func @transform_4(%arg0: i32) -> (i32, i32) {
    %c0_i32 = arith.constant 0 : i32
    %c0_i32_0 = arith.constant 0 : i32
    %c0_i32_1 = arith.constant 0 : i32
    return %c0_i32, %c0_i32_0 : i32, i32
  }
  func.func @transform_5(%arg0: i32) -> (i32, i32, i32) {
    %c0_i32 = arith.constant 0 : i32
    %c0_i32_0 = arith.constant 0 : i32
    %c0_i32_1 = arith.constant 0 : i32
    return %arg0, %c0_i32, %c0_i32_0 : i32, i32, i32
  }
}

</mosaic_0001>

<llo_original>
// kernel: tpu_custom_call.1
$region0: #{tpu_custom_call.1}
  #allocation0 [shape = 'u32[]', space=smem, size = 0x4, offset = 0x4, fixed_abs, tag = 'smem constant byte address 0x4 - core index']
  #allocation1 [shape = 'u32[144,128]{1,0:T(1,128)}', space=vmem, size = 0x12000, scoped, tag = 'internal scratch']
  %s0 = inlined_call_operand.hbm [shape: f32[2,32,256], index: 0, kind: input, shape index: {}]
  %s1 = inlined_call_operand.vmem [shape: f32[32,2], index: 1, kind: input, shape index: {}]
  %s2 = inlined_call_operand.vmem [shape: f32[1,2], index: 2, kind: input, shape index: {}]
  %s3 = inlined_call_operand.vmem [shape: f32[2,32], index: 3, kind: input, shape index: {}]
  %s4 = inlined_call_operand.vmem [shape: f32[1,32], index: 4, kind: input, shape index: {}]
  %s5 = inlined_call_operand.hbm [shape: f32[2,32,256], index: 5, kind: output, shape index: {}]
  %s6 = sld [smem:[#allocation0]]
  $region34: #{tpu_custom_call.1} parent=0
    _
  %s8 = ssub.s32 1, %s6
  %s9 = scalar_select 0, %s8, %s6
  $region1: #{tpu_custom_call.1} parent=0
    #allocation2 [shape = 'u8[65536]{0}', space=vmem, size = 0x10000, scoped, tag = 'input window, operand 0, single buffered']
    #allocation3 [shape = 's32[1]{0}', space=sflag, size = 0x4, scoped, tag = 'scoped memory for tpu_custom_call.1']
    #allocation4 [shape = 's32[1]{0}', space=sflag, size = 0x4, scoped, tag = 'scoped memory for tpu_custom_call.1']
    #allocation5 [shape = 'u8[65536]{0}', space=vmem, size = 0x10000, scoped, tag = 'output window, operand 0, single buffered']
    %10 = vsyncpa [#allocation3], 0
    %11 = vsyncpa [#allocation4], 0
    // Predicated region
    $region2: #{tpu_custom_call.1} parent=1 // pred_check
      _
    $region3: #{tpu_custom_call.1} parent=1 // pred_check_branch
      %13 = sbr.rel (0) target = $region5
    $region4: #{tpu_custom_call.1} parent=1 // pred_region
      %s15 = ssub.s32 2048, 2048
      %16 = vsyncadd [#allocation3], %s15
      %s17 = sshll.u32 [#allocation2], 4
      %s18 = int_to_ptr.vmem [resolvable:$true] %s17
      %23 = dma.hbm_to_vmem [thread:$0]  %s0, 2048, %s18, [#allocation3], 256, 256, 16
    $region5: #{tpu_custom_call.1} parent=1 // pred_fallthru
      _
    // Predicated region
    $region6: #{tpu_custom_call.1} parent=1 // pred_check
      _
    $region7: #{tpu_custom_call.1} parent=1 // pred_check_branch
      %25 = sbr.rel (0) target = $region9
    $region8: #{tpu_custom_call.1} parent=1 // pred_region
      _
    $region9: #{tpu_custom_call.1} parent=1 // pred_fallthru
      _
    // Predicated region
    $region10: #{tpu_custom_call.1} parent=1 // pred_check
      _
    $region11: #{tpu_custom_call.1} parent=1 // pred_check_branch
      %27 = sbr.rel (0) target = $region13
    $region12: #{tpu_custom_call.1} parent=1 // pred_region
      _
    $region13: #{tpu_custom_call.1} parent=1 // pred_fallthru
      _
    // Predicated region
    $region14: #{tpu_custom_call.1} parent=1 // pred_check
      _
    $region15: #{tpu_custom_call.1} parent=1 // pred_check_branch
      %29 = sbr.rel (0) target = $region17
    $region16: #{tpu_custom_call.1} parent=1 // pred_region
      _
    $region17: #{tpu_custom_call.1} parent=1 // pred_fallthru
      _
    // Predicated region
    $region18: #{tpu_custom_call.1} parent=1 // pred_check
      _
    $region19: #{tpu_custom_call.1} parent=1 // pred_check_branch
      %31 = sbr.rel (0) target = $region21
    $region20: #{tpu_custom_call.1} parent=1 // pred_region
      _
    $region21: #{tpu_custom_call.1} parent=1 // pred_fallthru
      _
    // Predicated region
    $region22: #{tpu_custom_call.1} parent=1 // pred_check
      _
    $region23: #{tpu_custom_call.1} parent=1 // pred_check_branch
      %33 = sbr.rel (0) target = $region25
    $region24: #{tpu_custom_call.1} parent=1 // pred_region
      %34 = dma.done [#allocation3], 2048
    $region25: #{tpu_custom_call.1} parent=1 // pred_fallthru
      _
    %v35 = vld [vmem:[#allocation2] sm:$0xff]
    %v36 = vld [vmem:[#allocation2 + $0x8] sm:$0xff]
    %v37 = vld [vmem:[#allocation2 + $0x10] sm:$0xff]
    %v38 = vld [vmem:[#allocation2 + $0x18] sm:$0xff]
    %v39 = vld [vmem:[#allocation2 + $0x20] sm:$0xff]
    %v40 = vld [vmem:[#allocation2 + $0x28] sm:$0xff]
    %v41 = vld [vmem:[#allocation2 + $0x30] sm:$0xff]
    %v42 = vld [vmem:[#allocation2 + $0x38] sm:$0xff]
    %v43 = vld [vmem:[#allocation2 + $0x40] sm:$0xff]
    %v44 = vld [vmem:[#allocation2 + $0x48] sm:$0xff]
    %v45 = vld [vmem:[#allocation2 + $0x50] sm:$0xff]
    %v46 = vld [vmem:[#allocation2 + $0x58] sm:$0xff]
    %v47 = vld [vmem:[#allocation2 + $0x60] sm:$0xff]
    %v48 = vld [vmem:[#allocation2 + $0x68] sm:$0xff]
    %v49 = vld [vmem:[#allocation2 + $0x70] sm:$0xff]
    %v50 = vld [vmem:[#allocation2 + $0x78] sm:$0xff]
    %v51 = vadd.f32 %v35, %v36
    %52 = vadd.xlane.f32.xlu0 %v51
    %v53 = vpop.xlane.xlu0 %52
    %v54 = vadd.f32 %v37, %v38
    %55 = vadd.xlane.f32.xlu0 %v54
    %v56 = vpop.xlane.xlu0 %55
    %v57 = vadd.f32 %v39, %v40
    %58 = vadd.xlane.f32.xlu0 %v57
    %v59 = vpop.xlane.xlu0 %58
    %v60 = vadd.f32 %v41, %v42
    %61 = vadd.xlane.f32.xlu0 %v60
    %v62 = vpop.xlane.xlu0 %61
    %v63 = vadd.f32 %v43, %v44
    %64 = vadd.xlane.f32.xlu0 %v63
    %v65 = vpop.xlane.xlu0 %64
    %v66 = vadd.f32 %v45, %v46
    %67 = vadd.xlane.f32.xlu0 %v66
    %v68 = vpop.xlane.xlu0 %67
    %v69 = vadd.f32 %v47, %v48
    %70 = vadd.xlane.f32.xlu0 %v69
    %v71 = vpop.xlane.xlu0 %70
    %v72 = vadd.f32 %v49, %v50
    %73 = vadd.xlane.f32.xlu0 %v72
    %v74 = vpop.xlane.xlu0 %73
    %v75 = vmul.f32 %v53, 0.00390625
    %v76 = vmul.f32 %v56, 0.00390625
    %v77 = vmul.f32 %v59, 0.00390625
    %v78 = vmul.f32 %v62, 0.00390625
    %v79 = vmul.f32 %v65, 0.00390625
    %v80 = vmul.f32 %v68, 0.00390625
    %v81 = vmul.f32 %v71, 0.00390625
    %v82 = vmul.f32 %v74, 0.00390625
    %v83 = vld [vmem:[%s1] sm:$0xff]
    %v84 = vld [vmem:[%s1 + $0x8] sm:$0xff]
    %v85 = vld [vmem:[%s1 + $0x10] sm:$0xff]
    %v86 = vld [vmem:[%s1 + $0x18] sm:$0xff]
    %v87 = vld [vmem:[%s2] sm:$0x1]
    %v88 = vld [vmem:[%s3] sm:$0x3]
    %v89 = vld [vmem:[%s4] sm:$0x1]
    %v91 = vlaneseq
    %v92 = vshrl.u32 %v91, 7
    %v93 = vsub.s32 0, %v92
    %v94 = vrot.slane %v87, %v93
    %v104 = vlaneseq
    %v105 = vand.u32 %v104, 127
    %v106 = vlaneseq
    %v107 = vshrl.u32 %v106, 7
    %v108 = vsub.s32 %v105, %v107
    %v109 = vrot.slane %v75, %v108
    %v110 = vadd.s32 %v105, 4294967288
    %v111 = vlaneseq
    %v112 = vshrl.u32 %v111, 7
    %v113 = vsub.s32 %v110, %v112
    %v114 = vrot.slane %v76, %v113
    %vm115 = vcmask 130112
    %v116 = vsel %vm115, %v114, %v109
    %v117 = vadd.s32 %v105, 4294967280
    %v118 = vlaneseq
    %v119 = vshrl.u32 %v118, 7
    %v120 = vsub.s32 %v117, %v119
    %v121 = vrot.slane %v77, %v120
    %vm122 = vcmask 195712
    %v123 = vsel %vm122, %v121, %v116
    %v124 = vadd.s32 %v105, 4294967272
    %v125 = vlaneseq
    %v126 = vshrl.u32 %v125, 7
    %v127 = vsub.s32 %v124, %v126
    %v128 = vrot.slane %v78, %v127
    %vm129 = vcmask 261312
    %v130 = vsel %vm129, %v128, %v123
    %v131 = vlaneseq
    %v132 = vshrl.u32 %v131, 7
    %v133 = vsub.s32 %v105, %v132
    %v134 = vrot.slane %v79, %v133
    %v135 = vlaneseq
    %v136 = vshrl.u32 %v135, 7
    %v137 = vsub.s32 %v110, %v136
    %v138 = vrot.slane %v80, %v137
    %v139 = vsel %vm115, %v138, %v134
    %v140 = vlaneseq
    %v141 = vshrl.u32 %v140, 7
    %v142 = vsub.s32 %v117, %v141
    %v143 = vrot.slane %v81, %v142
    %v144 = vsel %vm122, %v143, %v139
    %v145 = vlaneseq
    %v146 = vshrl.u32 %v145, 7
    %v147 = vsub.s32 %v124, %v146
    %v148 = vrot.slane %v82, %v147
    %v149 = vsel %vm129, %v148, %v144
    %vm150 = vcmask 1041409
    %v151 = vsel %vm150, %v149, %v130
    %vm152 = vcmask 261120
    %v153 = vsel %vm152, %v151, 0
    %155 = vmatprep.subr.mxu0 0.0
    %156 = vmatpush1.msra.mxu0 0.0
    %157 = vmatprep.subr.mxu0 0.0
    %158 = vmatpush1.msra.mxu0 0.0
    %159 = vmatprep.subr.mxu0 0.0
    %160 = vmatpush1.msra.mxu0 0.0
    %161 = vmatprep.subr.mxu0 0.0
    %162 = vmatpush1.msra.mxu0 0.0
    %163 = vmatprep.subr.mxu0 0.0
    %164 = vmatpush1.msra.mxu0 0.0
    %165 = vmatprep.subr.mxu0 0.0
    %166 = vmatpush1.msra.mxu0 0.0
    %167 = vmatprep.subr.mxu0 0.0
    %168 = vmatpush1.msra.mxu0 0.0
    %169 = vmatprep.subr.mxu0 0.0
    %170 = vmatpush1.msra.mxu0 0.0
    %171 = vmatprep.subr.mxu0 0.0
    %172 = vmatpush1.msra.mxu0 0.0
    %173 = vmatprep.subr.mxu0 0.0
    %174 = vmatpush1.msra.mxu0 0.0
    %175 = vmatprep.subr.mxu0 0.0
    %176 = vmatpush1.msra.mxu0 0.0
    %177 = vmatprep.subr.mxu0 0.0
    %178 = vmatpush1.msra.mxu0 0.0
    %179 = vmatprep.subr.mxu0 0.0
    %180 = vmatpush1.msra.mxu0 %v86
    %181 = vmatprep.subr.mxu0 0.0
    %182 = vmatpush1.msra.mxu0 %v85
    %183 = vmatprep.subr.mxu0 0.0
    %184 = vmatpush1.msra.mxu0 %v84
    %185 = vmatprep.subr.mxu0 0.0
    %186 = vmatpush1.msra.mxu0 %v83
    %187 = vmatprep.subr.mxu0 0.0
    %188 = vmatpush2.msra.mxu0 0.0
    %189 = vmatprep.subr.mxu0 0.0
    %190 = vmatpush2.msra.mxu0 0.0
    %191 = vmatprep.subr.mxu0 0.0
    %192 = vmatpush2.msra.mxu0 0.0
    %193 = vmatprep.subr.mxu0 0.0
    %194 = vmatpush2.msra.mxu0 0.0
    %195 = vmatprep.subr.mxu0 0.0
    %196 = vmatpush2.msra.mxu0 0.0
    %197 = vmatprep.subr.mxu0 0.0
    %198 = vmatpush2.msra.mxu0 0.0
    %199 = vmatprep.subr.mxu0 0.0
    %200 = vmatpush2.msra.mxu0 0.0
    %201 = vmatprep.subr.mxu0 0.0
    %202 = vmatpush2.msra.mxu0 0.0
    %203 = vmatprep.subr.mxu0 0.0
    %204 = vmatpush2.msra.mxu0 0.0
    %205 = vmatprep.subr.mxu0 0.0
    %206 = vmatpush2.msra.mxu0 0.0
    %207 = vmatprep.subr.mxu0 0.0
    %208 = vmatpush2.msra.mxu0 0.0
    %209 = vmatprep.subr.mxu0 0.0
    %210 = vmatpush2.msra.mxu0 0.0
    %211 = vmatprep.subr.mxu0 0.0
    %212 = vmatpush2.msra.mxu0 0.0
    %213 = vmatprep.subr.mxu0 0.0
    %214 = vmatpush2.msra.mxu0 0.0
    %215 = vmatprep.subr.mxu0 0.0
    %216 = vmatpush2.msra.mxu0 0.0
    %217 = vmatprep.subr.mxu0 0.0
    %218 = vmatpush2.msra.mxu0 0.0
    %219 = vmatprep.mubr.f32.mxu0 0.0
    %220 = vmatmul.mubr.f32.gmra.mxu0 %v153
    %v221 = vpop.f32.mrf.mxu0
    %v222 = vadd.f32 %v94, %v221
    %v223 = vpop.f32.mrf.mxu0
    %224 = vdwg.mxu0
    %v225 = vmax.f32 %v222, 0.0
    %v227 = vlaneseq
    %v228 = vshrl.u32 %v227, 7
    %v229 = vsub.s32 0, %v228
    %v230 = vrot.slane %v89, %v229
    %vm232 = vcmask 15360
    %v234 = vsel %vm232, %v225, 0
    %vm236 = vcmask 1041408
    %v238 = vsel %vm236, %v88, 0
    %240 = vmatprep.subr.mxu0 0.0
    %241 = vmatpush1.msra.mxu0 0.0
    %242 = vmatprep.subr.mxu0 0.0
    %243 = vmatpush1.msra.mxu0 0.0
    %244 = vmatprep.subr.mxu0 0.0
    %245 = vmatpush1.msra.mxu0 0.0
    %246 = vmatprep.subr.mxu0 0.0
    %247 = vmatpush1.msra.mxu0 0.0
    %248 = vmatprep.subr.mxu0 0.0
    %249 = vmatpush1.msra.mxu0 0.0
    %250 = vmatprep.subr.mxu0 0.0
    %251 = vmatpush1.msra.mxu0 0.0
    %252 = vmatprep.subr.mxu0 0.0
    %253 = vmatpush1.msra.mxu0 0.0
    %254 = vmatprep.subr.mxu0 0.0
    %255 = vmatpush1.msra.mxu0 0.0
    %256 = vmatprep.subr.mxu0 0.0
    %257 = vmatpush1.msra.mxu0 0.0
    %258 = vmatprep.subr.mxu0 0.0
    %259 = vmatpush1.msra.mxu0 0.0
    %260 = vmatprep.subr.mxu0 0.0
    %261 = vmatpush1.msra.mxu0 0.0
    %262 = vmatprep.subr.mxu0 0.0
    %263 = vmatpush1.msra.mxu0 0.0
    %264 = vmatprep.subr.mxu0 0.0
    %265 = vmatpush1.msra.mxu0 0.0
    %266 = vmatprep.subr.mxu0 0.0
    %267 = vmatpush1.msra.mxu0 0.0
    %268 = vmatprep.subr.mxu0 0.0
    %269 = vmatpush1.msra.mxu0 0.0
    %270 = vmatprep.subr.mxu0 0.0
    %271 = vmatpush1.msra.mxu0 %v238
    %272 = vmatprep.subr.mxu0 0.0
    %273 = vmatpush2.msra.mxu0 0.0
    %274 = vmatprep.subr.mxu0 0.0
    %275 = vmatpush2.msra.mxu0 0.0
    %276 = vmatprep.subr.mxu0 0.0
    %277 = vmatpush2.msra.mxu0 0.0
    %278 = vmatprep.subr.mxu0 0.0
    %279 = vmatpush2.msra.mxu0 0.0
    %280 = vmatprep.subr.mxu0 0.0
    %281 = vmatpush2.msra.mxu0 0.0
    %282 = vmatprep.subr.mxu0 0.0
    %283 = vmatpush2.msra.mxu0 0.0
    %284 = vmatprep.subr.mxu0 0.0
    %285 = vmatpush2.msra.mxu0 0.0
    %286 = vmatprep.subr.mxu0 0.0
    %287 = vmatpush2.msra.mxu0 0.0
    %288 = vmatprep.subr.mxu0 0.0
    %289 = vmatpush2.msra.mxu0 0.0
    %290 = vmatprep.subr.mxu0 0.0
    %291 = vmatpush2.msra.mxu0 0.0
    %292 = vmatprep.subr.mxu0 0.0
    %293 = vmatpush2.msra.mxu0 0.0
    %294 = vmatprep.subr.mxu0 0.0
    %295 = vmatpush2.msra.mxu0 0.0
    %296 = vmatprep.subr.mxu0 0.0
    %297 = vmatpush2.msra.mxu0 0.0
    %298 = vmatprep.subr.mxu0 0.0
    %299 = vmatpush2.msra.mxu0 0.0
    %300 = vmatprep.subr.mxu0 0.0
    %301 = vmatpush2.msra.mxu0 0.0
    %302 = vmatprep.subr.mxu0 0.0
    %303 = vmatpush2.msra.mxu0 0.0
    %304 = vmatprep.mubr.f32.mxu0 0.0
    %305 = vmatmul.mubr.f32.gmra.mxu0 %v234
    %v306 = vpop.f32.mrf.mxu0
    %v307 = vadd.f32 %v230, %v306
    %v308 = vpop.f32.mrf.mxu0
    %309 = vdwg.mxu0
    %v310 = vxor.u32 %v307, 2147483648
    %v311 = vmul.f32 %v310, 1.442695
    %v312 = vpow.pop %v311
    %v313 = vadd.f32 %v312, 1.0
    %v314 = vrcp.pop %v313
    %v315 = vmul.f32 1.0, %v314
    %v316 = vlaneseq
    %v317 = vshrl.u32 %v316, 7
    %v318 = vsub.s32 0, %v317
    %v319 = vrot.slane %v315, %v318
    %321 = vbcast.lane.b32.xlu0 %v319, 256
    %v322 = vpop.permute.xlu0 %321
    %s324 = sor.u32 256, 8
    %325 = vbcast.lane.b32.xlu0 %v319, %s324
    %v326 = vpop.permute.xlu0 %325
    %s328 = sor.u32 256, 16
    %329 = vbcast.lane.b32.xlu0 %v319, %s328
    %v330 = vpop.permute.xlu0 %329
    %s332 = sor.u32 256, 24
    %333 = vbcast.lane.b32.xlu0 %v319, %s332
    %v334 = vpop.permute.xlu0 %333
    %v335 = vlaneseq
    %v336 = vshrl.u32 %v335, 7
    %v337 = vsub.s32 1, %v336
    %v338 = vrot.slane %v315, %v337
    %340 = vbcast.lane.b32.xlu0 %v338, 256
    %v341 = vpop.permute.xlu0 %340
    %s343 = sor.u32 256, 8
    %344 = vbcast.lane.b32.xlu0 %v338, %s343
    %v345 = vpop.permute.xlu0 %344
    %s347 = sor.u32 256, 16
    %348 = vbcast.lane.b32.xlu0 %v338, %s347
    %v349 = vpop.permute.xlu0 %348
    %s351 = sor.u32 256, 24
    %352 = vbcast.lane.b32.xlu0 %v338, %s351
    %v353 = vpop.permute.xlu0 %352
    %v354 = vmul.f32 %v35, %v322
    %v355 = vmul.f32 %v36, %v322
    %v356 = vmul.f32 %v37, %v326
    %v357 = vmul.f32 %v38, %v326
    %v358 = vmul.f32 %v39, %v330
    %v359 = vmul.f32 %v40, %v330
    %v360 = vmul.f32 %v41, %v334
    %v361 = vmul.f32 %v42, %v334
    %v362 = vmul.f32 %v43, %v341
    %v363 = vmul.f32 %v44, %v341
    %v364 = vmul.f32 %v45, %v345
    %v365 = vmul.f32 %v46, %v345
    %v366 = vmul.f32 %v47, %v349
    %v367 = vmul.f32 %v48, %v349
    %v368 = vmul.f32 %v49, %v353
    %v369 = vmul.f32 %v50, %v353
    %370 = vst [vmem:[#allocation5] sm:$0xff] %v354
    %371 = vst [vmem:[#allocation5 + $0x8] sm:$0xff] %v355
    %372 = vst [vmem:[#allocation5 + $0x10] sm:$0xff] %v356
    %373 = vst [vmem:[#allocation5 + $0x18] sm:$0xff] %v357
    %374 = vst [vmem:[#allocation5 + $0x20] sm:$0xff] %v358
    %375 = vst [vmem:[#allocation5 + $0x28] sm:$0xff] %v359
    %376 = vst [vmem:[#allocation5 + $0x30] sm:$0xff] %v360
    %377 = vst [vmem:[#allocation5 + $0x38] sm:$0xff] %v361
    %378 = vst [vmem:[#allocation5 + $0x40] sm:$0xff] %v362
    %379 = vst [vmem:[#allocation5 + $0x48] sm:$0xff] %v363
    %380 = vst [vmem:[#allocation5 + $0x50] sm:$0xff] %v364
    %381 = vst [vmem:[#allocation5 + $0x58] sm:$0xff] %v365
    %382 = vst [vmem:[#allocation5 + $0x60] sm:$0xff] %v366
    %383 = vst [vmem:[#allocation5 + $0x68] sm:$0xff] %v367
    %384 = vst [vmem:[#allocation5 + $0x70] sm:$0xff] %v368
    %385 = vst [vmem:[#allocation5 + $0x78] sm:$0xff] %v369
    // Predicated region
    $region26: #{tpu_custom_call.1} parent=1 // pred_check
      _
    $region27: #{tpu_custom_call.1} parent=1 // pred_check_branch
      %387 = sbr.rel (0) target = $region29
    $region28: #{tpu_custom_call.1} parent=1 // pred_region
      %s389 = ssub.s32 2048, 2048
      %390 = vsyncadd [#allocation4], %s389
      %s391 = sshll.u32 [#allocation5], 4
      %s392 = int_to_ptr.vmem [resolvable:$true] %s391
      %397 = dma.vmem_to_hbm [thread:$0]  %s392, 2048, %s5, [#allocation4], 256, 256, 16
    $region29: #{tpu_custom_call.1} parent=1 // pred_fallthru
      _
    // Predicated region
    $region30: #{tpu_custom_call.1} parent=1 // pred_check
      _
    $region31: #{tpu_custom_call.1} parent=1 // pred_check_branch
      %399 = sbr.rel (0) target = $region33
    $region32: #{tpu_custom_call.1} parent=1 // pred_region
      %400 = dma.done [#allocation4], 2048
    $region33: #{tpu_custom_call.1} parent=1 // pred_fallthru
      _
    %401 = vsyncpa [#allocation3], 1
    %402 = vsyncpa [#allocation4], 1

</llo_original>
